<compile_context>
chip_gen: v5e
topology: v5e:2x2
jax: 0.10.0
libtpu: 0.0.40
codegen_flags: <defaults>
</compile_context>

<pallas_src>
import functools

import jax
import jax.numpy as jnp
from jax import lax
from jax.experimental import pallas as pl
from jax.experimental.pallas import tpu as pltpu

_LANE = 128     # vreg lane width
_SUBLANE = 8    # f32 sublane height


def _round_up(n, m):
    return ((n + m - 1) // m) * m


def _mlp_kernel(x_ref, w_in_ref, b_in_ref, w_h_ref, b_h_ref,
                w_out_ref, b_out_ref, o_ref, *, n_layers, unroll_layers):
    # Input layer (no activation, matches the PyTorch module).  All operands
    # are already f32 and lane-padded -> full-width MXU/VPU ops, no masks.
    h = jnp.dot(x_ref[...], w_in_ref[...],
                preferred_element_type=jnp.float32) + b_in_ref[...]

    # Hidden layers with ReLU.  Padded lanes stay exactly 0 through every
    # layer (zero weight rows/cols, zero bias, relu(0)=0).
    if n_layers > 0:
        if unroll_layers:
            for i in range(n_layers):
                h = jnp.maximum(
                    jnp.dot(h, w_h_ref[i], preferred_element_type=jnp.float32)
                    + b_h_ref[i], 0.0)
        else:
            def body(i, h):
                return jnp.maximum(
                    jnp.dot(h, w_h_ref[i], preferred_element_type=jnp.float32)
                    + b_h_ref[i], 0.0)
            h = lax.fori_loop(0, n_layers, body, h)

    # Output layer (no activation).  Lane-dense (padded-to-128) store.
    o_ref[...] = (jnp.dot(h, w_out_ref[...],
                          preferred_element_type=jnp.float32)
                  + b_out_ref[...]).astype(o_ref.dtype)


def iris_mlp_forward(x, params, n_layers, *, batch_tile=256):
    """x: (B, 4) float32. params: dict of weights/biases. Returns (B, 3)."""
    w_in, b_in, w_h, b_h, w_out, b_out = (
        params["w_in"], params["b_in"], params["w_h"], params["b_h"],
        params["w_out"], params["b_out"],
    )
    B, d_in = x.shape
    n_units = w_in.shape[1]
    n_out = w_out.shape[1]

    # ---- lane/sublane-friendly padded sizes (zero padding, sliced off later)
    d_in_p = _round_up(d_in, _LANE)
    u_p = _round_up(n_units, _LANE)
    out_p = _round_up(n_out, _LANE)

    # Batch tile: fill the MXU M dim for big batches, don't over-pad tiny ones.
    tb = min(batch_tile, _round_up(B, _SUBLANE))
    b_p = _round_up(B, tb)

    def pad2(a, r, c):
        return jnp.pad(a, ((0, r - a.shape[0]), (0, c - a.shape[1])))

    x_p = pad2(x, b_p, d_in_p)
    w_in_p = pad2(w_in, d_in_p, u_p)
    b_in_p = pad2(b_in, 1, u_p)
    w_out_p = pad2(w_out, u_p, out_p)
    b_out_p = pad2(b_out, 1, out_p)

    if n_layers > 0:
        w_h_p = jnp.pad(w_h, ((0, 0), (0, u_p - w_h.shape[1]),
                              (0, u_p - w_h.shape[2])))
        b_h_p = jnp.pad(b_h, ((0, 0), (0, 0), (0, u_p - b_h.shape[2])))
        n_h = n_layers
    else:
        # Dummy (never read — the layer loop has trip count 0).
        w_h_p = jnp.zeros((1, u_p, u_p), jnp.float32)
        b_h_p = jnp.zeros((1, 1, u_p), jnp.float32)
        n_h = 1

    kernel = functools.partial(
        _mlp_kernel, n_layers=n_layers, unroll_layers=(n_layers <= 8))

    # Weight VMEM footprint (resident across all batch tiles) + activations.
    weight_bytes = 4 * (d_in_p * u_p + n_h * u_p * u_p + u_p * out_p + 3 * u_p)
    act_bytes = 4 * 2 * tb * (d_in_p + out_p)          # double-buffered x / out
    vmem_limit = min(96 * 1024 * 1024,
                     _round_up(2 * (weight_bytes + act_bytes) + (4 << 20), 1 << 20))

    grid_spec = pltpu.PrefetchScalarGridSpec(
        num_scalar_prefetch=0,
        grid=(b_p // tb,),
        in_specs=[
            pl.BlockSpec((tb, d_in_p), lambda i: (i, 0)),        # x: batch-tiled
            pl.BlockSpec((d_in_p, u_p), lambda i: (0, 0)),       # weights resident
            pl.BlockSpec((1, u_p), lambda i: (0, 0)),
            pl.BlockSpec((n_h, u_p, u_p), lambda i: (0, 0, 0)),
            pl.BlockSpec((n_h, 1, u_p), lambda i: (0, 0, 0)),
            pl.BlockSpec((u_p, out_p), lambda i: (0, 0)),
            pl.BlockSpec((1, out_p), lambda i: (0, 0)),
        ],
        out_specs=pl.BlockSpec((tb, out_p), lambda i: (i, 0)),
    )

    out_padded = pl.pallas_call(
        kernel,
        out_shape=jax.ShapeDtypeStruct((b_p, out_p), jnp.float32),
        grid_spec=grid_spec,
        compiler_params=pltpu.CompilerParams(
            dimension_semantics=("parallel",),   # v7x: both TCs split batch tiles
            vmem_limit_bytes=vmem_limit,         # v5e: lift 16 MiB default cap
        ),
    )(x_p, w_in_p, b_in_p, w_h_p, b_h_p, w_out_p, b_out_p)

    return out_padded[:B, :n_out]


def init_params(key, n_units, n_layers):
    """Deterministic init mimicking nn.Linear default (U[-1/sqrt(fan_in), 1/sqrt(fan_in)])."""
    def linear(key, fan_in, fan_out):
        kw, kb = jax.random.split(key)
        bound = 1.0 / jnp.sqrt(float(fan_in))
        w = jax.random.uniform(kw, (fan_in, fan_out), jnp.float32, -bound, bound)
        b = jax.random.uniform(kb, (1, fan_out), jnp.float32, -bound, bound)
        return w, b

    keys = jax.random.split(key, n_layers + 2)
    w_in, b_in = linear(keys[0], 4, n_units)
    hw, hb = [], []
    for i in range(n_layers):
        w, b = linear(keys[1 + i], n_units, n_units)
        hw.append(w)
        hb.append(b)
    w_out, b_out = linear(keys[-1], n_units, 3)
    if n_layers > 0:
        w_h = jnp.stack(hw, axis=0)           # (nLayers, nUnits, nUnits)
        b_h = jnp.stack(hb, axis=0)           # (nLayers, 1, nUnits)
    else:
        w_h = jnp.zeros((0, n_units, n_units), jnp.float32)
        b_h = jnp.zeros((0, 1, n_units), jnp.float32)
    return {
        "w_in": w_in, "b_in": b_in,
        "w_h": w_h, "b_h": b_h,
        "w_out": w_out, "b_out": b_out,
    }


def reference_forward(x, params, n_layers):
    h = x @ params["w_in"] + params["b_in"]
    for i in range(n_layers):
        h = jnp.maximum(h @ params["w_h"][i] + params["b_h"][i], 0.0)
    return h @ params["w_out"] + params["b_out"]


if __name__ == "__main__":
    n_units, n_layers, batch = 32, 2, 8

    key = jax.random.PRNGKey(0)
    k_x, k_p = jax.random.split(key)
    x = jax.random.normal(k_x, (batch, 4), dtype=jnp.float32)
    params = init_params(k_p, n_units, n_layers)

    out = iris_mlp_forward(x, params, n_layers)
    out = jax.block_until_ready(out)

    ref = reference_forward(x, params, n_layers)
    assert out.shape == (batch, 3)
    assert jnp.allclose(out, ref, atol=1e-5, rtol=1e-5), "mismatch vs JAX reference"

    print("KERNEL_OK")
</pallas_src>

<mosaic_0001>
module attributes {stable_mosaic.version = 11 : i64} {
  func.func @_mlp_kernel(%arg0: i32, %arg1: memref<8x128xf32, #tpu.memory_space<vmem>>, %arg2: memref<128x128xf32, #tpu.memory_space<vmem>>, %arg3: memref<1x128xf32, #tpu.memory_space<vmem>>, %arg4: memref<2x128x128xf32, #tpu.memory_space<vmem>>, %arg5: memref<2x1x128xf32, #tpu.memory_space<vmem>>, %arg6: memref<128x128xf32, #tpu.memory_space<vmem>>, %arg7: memref<1x128xf32, #tpu.memory_space<vmem>>, %arg8: memref<8x128xf32, #tpu.memory_space<vmem>>) attributes {dimension_semantics = [#tpu.dimension_semantics<parallel>], iteration_bounds = array<i64: 1>, scalar_prefetch = 0 : i64, scratch_operands = 0 : i64, tpu.core_type = #tpu.core_type<tc>, window_params = [{transform_indices = @transform_0, window_bounds = array<i64: 8, 128>}, {pipeline_mode = #tpu.pipeline_mode<synchronous>, transform_indices = @transform_1, window_bounds = array<i64: 128, 128>}, {pipeline_mode = #tpu.pipeline_mode<synchronous>, transform_indices = @transform_2, window_bounds = array<i64: 1, 128>}, {pipeline_mode = #tpu.pipeline_mode<synchronous>, transform_indices = @transform_3, window_bounds = array<i64: 2, 128, 128>}, {pipeline_mode = #tpu.pipeline_mode<synchronous>, transform_indices = @transform_4, window_bounds = array<i64: 2, 1, 128>}, {pipeline_mode = #tpu.pipeline_mode<synchronous>, transform_indices = @transform_5, window_bounds = array<i64: 128, 128>}, {pipeline_mode = #tpu.pipeline_mode<synchronous>, transform_indices = @transform_6, window_bounds = array<i64: 1, 128>}, {transform_indices = @transform_7, window_bounds = array<i64: 8, 128>}]} {
    %c0 = arith.constant 0 : index
    %c0_0 = arith.constant 0 : index
    %0 = vector.load %arg1[%c0, %c0_0] : memref<8x128xf32, #tpu.memory_space<vmem>>, vector<8x128xf32>
    %c0_1 = arith.constant 0 : index
    %c0_2 = arith.constant 0 : index
    %1 = vector.load %arg2[%c0_1, %c0_2] : memref<128x128xf32, #tpu.memory_space<vmem>>, vector<128x128xf32>
    %cst = arith.constant dense<0.000000e+00> : vector<8x128xf32>
    %2 = tpu.matmul %0, %1, %cst {dimension_numbers = #tpu.dot_dimension_numbers<[1], [0], [0], [1], [0, 0, 1, 1], [], []>} : vector<8x128xf32>, vector<128x128xf32>, vector<8x128xf32> -> vector<8x128xf32>
    %c0_3 = arith.constant 0 : index
    %c0_4 = arith.constant 0 : index
    %3 = vector.load %arg3[%c0_3, %c0_4] : memref<1x128xf32, #tpu.memory_space<vmem>>, vector<1x128xf32>
    %4 = vector.broadcast %3 : vector<1x128xf32> to vector<8x128xf32>
    %5 = arith.addf %2, %4 : vector<8x128xf32>
    %c0_5 = arith.constant 0 : index
    %c0_6 = arith.constant 0 : index
    %c0_7 = arith.constant 0 : index
    %6 = vector.load %arg4[%c0_5, %c0_6, %c0_7] : memref<2x128x128xf32, #tpu.memory_space<vmem>>, vector<1x128x128xf32>
    %7 = vector.shape_cast %6 : vector<1x128x128xf32> to vector<128x128xf32>
    %cst_8 = arith.constant dense<0.000000e+00> : vector<8x128xf32>
    %8 = tpu.matmul %5, %7, %cst_8 {dimension_numbers = #tpu.dot_dimension_numbers<[1], [0], [0], [1], [0, 0, 1, 1], [], []>} : vector<8x128xf32>, vector<128x128xf32>, vector<8x128xf32> -> vector<8x128xf32>
    %c0_9 = arith.constant 0 : index
    %c0_10 = arith.constant 0 : index
    %c0_11 = arith.constant 0 : index
    %9 = vector.load %arg5[%c0_9, %c0_10, %c0_11] : memref<2x1x128xf32, #tpu.memory_space<vmem>>, vector<1x1x128xf32>
    %10 = vector.shape_cast %9 : vector<1x1x128xf32> to vector<1x128xf32>
    %11 = vector.broadcast %10 : vector<1x128xf32> to vector<8x128xf32>
    %12 = arith.addf %8, %11 : vector<8x128xf32>
    %cst_12 = arith.constant 0.000000e+00 : f32
    %13 = vector.broadcast %cst_12 : f32 to vector<8x128xf32>
    %14 = arith.maximumf %12, %13 : vector<8x128xf32>
    %c1 = arith.constant 1 : index
    %c0_13 = arith.constant 0 : index
    %c0_14 = arith.constant 0 : index
    %15 = vector.load %arg4[%c1, %c0_13, %c0_14] : memref<2x128x128xf32, #tpu.memory_space<vmem>>, vector<1x128x128xf32>
    %16 = vector.shape_cast %15 : vector<1x128x128xf32> to vector<128x128xf32>
    %cst_15 = arith.constant dense<0.000000e+00> : vector<8x128xf32>
    %17 = tpu.matmul %14, %16, %cst_15 {dimension_numbers = #tpu.dot_dimension_numbers<[1], [0], [0], [1], [0, 0, 1, 1], [], []>} : vector<8x128xf32>, vector<128x128xf32>, vector<8x128xf32> -> vector<8x128xf32>
    %c1_16 = arith.constant 1 : index
    %c0_17 = arith.constant 0 : index
    %c0_18 = arith.constant 0 : index
    %18 = vector.load %arg5[%c1_16, %c0_17, %c0_18] : memref<2x1x128xf32, #tpu.memory_space<vmem>>, vector<1x1x128xf32>
    %19 = vector.shape_cast %18 : vector<1x1x128xf32> to vector<1x128xf32>
    %20 = vector.broadcast %19 : vector<1x128xf32> to vector<8x128xf32>
    %21 = arith.addf %17, %20 : vector<8x128xf32>
    %cst_19 = arith.constant 0.000000e+00 : f32
    %22 = vector.broadcast %cst_19 : f32 to vector<8x128xf32>
    %23 = arith.maximumf %21, %22 : vector<8x128xf32>
    %c0_20 = arith.constant 0 : index
    %c0_21 = arith.constant 0 : index
    %24 = vector.load %arg6[%c0_20, %c0_21] : memref<128x128xf32, #tpu.memory_space<vmem>>, vector<128x128xf32>
    %cst_22 = arith.constant dense<0.000000e+00> : vector<8x128xf32>
    %25 = tpu.matmul %23, %24, %cst_22 {dimension_numbers = #tpu.dot_dimension_numbers<[1], [0], [0], [1], [0, 0, 1, 1], [], []>} : vector<8x128xf32>, vector<128x128xf32>, vector<8x128xf32> -> vector<8x128xf32>
    %c0_23 = arith.constant 0 : index
    %c0_24 = arith.constant 0 : index
    %26 = vector.load %arg7[%c0_23, %c0_24] : memref<1x128xf32, #tpu.memory_space<vmem>>, vector<1x128xf32>
    %27 = vector.broadcast %26 : vector<1x128xf32> to vector<8x128xf32>
    %28 = arith.addf %25, %27 : vector<8x128xf32>
    %c0_25 = arith.constant 0 : index
    %c0_26 = arith.constant 0 : index
    %29 = vector.load %arg8[%c0_25, %c0_26] : memref<8x128xf32, #tpu.memory_space<vmem>>, vector<8x128xf32>
    tpu.vector_store %arg8[%c0_25, %c0_26], %28 {strides = array<i32>} : memref<8x128xf32, #tpu.memory_space<vmem>>, vector<8x128xf32>,
    return
  }
  func.func @transform_0(%arg0: i32) -> (i32, i32) {
    %c0_i32 = arith.constant 0 : i32
    %c0_i32_0 = arith.constant 0 : i32
    return %arg0, %c0_i32 : i32, i32
  }
  func.func @transform_1(%arg0: i32) -> (i32, i32) {
    %c0_i32 = arith.constant 0 : i32
    %c0_i32_0 = arith.constant 0 : i32
    %c0_i32_1 = arith.constant 0 : i32
    return %c0_i32, %c0_i32_0 : i32, i32
  }
  func.func @transform_2(%arg0: i32) -> (i32, i32) {
    %c0_i32 = arith.constant 0 : i32
    %c0_i32_0 = arith.constant 0 : i32
    %c0_i32_1 = arith.constant 0 : i32
    return %c0_i32, %c0_i32_0 : i32, i32
  }
  func.func @transform_3(%arg0: i32) -> (i32, i32, i32) {
    %c0_i32 = arith.constant 0 : i32
    %c0_i32_0 = arith.constant 0 : i32
    %c0_i32_1 = arith.constant 0 : i32
    %c0_i32_2 = arith.constant 0 : i32
    return %c0_i32, %c0_i32_0, %c0_i32_1 : i32, i32, i32
  }
  func.func @transform_4(%arg0: i32) -> (i32, i32, i32) {
    %c0_i32 = arith.constant 0 : i32
    %c0_i32_0 = arith.constant 0 : i32
    %c0_i32_1 = arith.constant 0 : i32
    %c0_i32_2 = arith.constant 0 : i32
    return %c0_i32, %c0_i32_0, %c0_i32_1 : i32, i32, i32
  }
  func.func @transform_5(%arg0: i32) -> (i32, i32) {
    %c0_i32 = arith.constant 0 : i32
    %c0_i32_0 = arith.constant 0 : i32
    %c0_i32_1 = arith.constant 0 : i32
    return %c0_i32, %c0_i32_0 : i32, i32
  }
  func.func @transform_6(%arg0: i32) -> (i32, i32) {
    %c0_i32 = arith.constant 0 : i32
    %c0_i32_0 = arith.constant 0 : i32
    %c0_i32_1 = arith.constant 0 : i32
    return %c0_i32, %c0_i32_0 : i32, i32
  }
  func.func @transform_7(%arg0: i32) -> (i32, i32) {
    %c0_i32 = arith.constant 0 : i32
    %c0_i32_0 = arith.constant 0 : i32
    return %arg0, %c0_i32 : i32, i32
  }
}

</mosaic_0001>

<llo_original>
// kernel: tpu_custom_call.1
$region0: #{tpu_custom_call.1}
  #allocation0 [shape = 'u32[]', space=smem, size = 0x4, offset = 0x4, fixed_abs, tag = 'smem constant byte address 0x4 - core index']
  #allocation1 [shape = 'u32[72,128]{1,0:T(1,128)}', space=vmem, size = 0x9000, scoped, tag = 'internal scratch']
  %s0 = inlined_call_operand.hbm [shape: f32[8,128], index: 0, kind: input, shape index: {}]
  %s1 = inlined_call_operand.hbm [shape: f32[128,128], index: 1, kind: input, shape index: {}]
  %s2 = inlined_call_operand.vmem [shape: f32[1,128], index: 2, kind: input, shape index: {}]
  %s3 = inlined_call_operand.hbm [shape: f32[2,128,128], index: 3, kind: input, shape index: {}]
  %s4 = inlined_call_operand.vmem [shape: f32[2,1,128], index: 4, kind: input, shape index: {}]
  %s5 = inlined_call_operand.hbm [shape: f32[128,128], index: 5, kind: input, shape index: {}]
  %s6 = inlined_call_operand.vmem [shape: f32[1,128], index: 6, kind: input, shape index: {}]
  %s7 = inlined_call_operand.hbm [shape: f32[8,128], index: 7, kind: output, shape index: {}]
  %s8 = sld [smem:[#allocation0]]
  $region54: #{tpu_custom_call.1} parent=0
    _
  %s10 = ssub.s32 1, %s8
  %s11 = scalar_select 0, %s10, %s8
  $region1: #{tpu_custom_call.1} parent=0
    #allocation2 [shape = 'u8[4096]{0}', space=vmem, size = 0x1000, scoped, tag = 'input window, operand 0, single buffered']
    #allocation3 [shape = 's32[1]{0}', space=sflag, size = 0x4, scoped, tag = 'scoped memory for tpu_custom_call.1']
    #allocation4 [shape = 's32[1]{0}', space=sflag, size = 0x4, scoped, tag = 'scoped memory for tpu_custom_call.1']
    #allocation5 [shape = 'u8[65536]{0}', space=vmem, size = 0x10000, scoped, tag = 'input window, operand 1, single buffered']
    #allocation6 [shape = 's32[1]{0}', space=sflag, size = 0x4, scoped, tag = 'scoped memory for tpu_custom_call.1']
    #allocation7 [shape = 'u8[131072]{0}', space=vmem, size = 0x20000, scoped, tag = 'input window, operand 3, single buffered']
    #allocation8 [shape = 'u8[65536]{0}', space=vmem, size = 0x10000, scoped, tag = 'input window, operand 5, single buffered']
    #allocation9 [shape = 's32[1]{0}', space=sflag, size = 0x4, scoped, tag = 'scoped memory for tpu_custom_call.1']
    #allocation10 [shape = 'u8[4096]{0}', space=vmem, size = 0x1000, scoped, tag = 'output window, operand 0, single buffered']
    %12 = vsyncpa [#allocation3], 0
    %13 = vsyncpa [#allocation6], 0
    %14 = vsyncpa [#allocation9], 0
    %15 = vsyncpa [#allocation4], 0
    // Predicated region
    $region2: #{tpu_custom_call.1} parent=1 // pred_check
      _
    $region3: #{tpu_custom_call.1} parent=1 // pred_check_branch
      %17 = sbr.rel (0) target = $region5
    $region4: #{tpu_custom_call.1} parent=1 // pred_region
      %19 = vsyncadd [#allocation3], 0
      %s21 = sshll.u32 %s0, 4
      %s22 = int_to_ptr.hbm [resolvable:$true] %s21
      %s23 = sshll.u32 [#allocation2], 4
      %s24 = int_to_ptr.vmem [resolvable:$true] %s23
      %26 = dma.hbm_to_vmem [thread:$0]  %s22, 128, %s24, [#allocation3]
    $region5: #{tpu_custom_call.1} parent=1 // pred_fallthru
      _
    // Predicated region
    $region6: #{tpu_custom_call.1} parent=1 // pred_check
      _
    $region7: #{tpu_custom_call.1} parent=1 // pred_check_branch
      %28 = sbr.rel (0) target = $region9
    $region8: #{tpu_custom_call.1} parent=1 // pred_region
      %30 = vsyncadd [#allocation6], 0
      %s31 = sshll.u32 %s1, 4
      %s32 = int_to_ptr.hbm [resolvable:$true] %s31
      %s33 = sshll.u32 [#allocation5], 4
      %s34 = int_to_ptr.vmem [resolvable:$true] %s33
      %39 = dma.hbm_to_vmem [thread:$0]  %s32, 2048, %s34, [#allocation6], 128, 128, 8
    $region9: #{tpu_custom_call.1} parent=1 // pred_fallthru
      _
    // Predicated region
    $region10: #{tpu_custom_call.1} parent=1 // pred_check
      _
    $region11: #{tpu_custom_call.1} parent=1 // pred_check_branch
      %41 = sbr.rel (0) target = $region13
    $region12: #{tpu_custom_call.1} parent=1 // pred_region
      _
    $region13: #{tpu_custom_call.1} parent=1 // pred_fallthru
      _
    // Predicated region
    $region14: #{tpu_custom_call.1} parent=1 // pred_check
      _
    $region15: #{tpu_custom_call.1} parent=1 // pred_check_branch
      %43 = sbr.rel (0) target = $region17
    $region16: #{tpu_custom_call.1} parent=1 // pred_region
      %45 = vsyncadd [#allocation6], 0
      %s46 = sshll.u32 %s3, 4
      %s47 = int_to_ptr.hbm [resolvable:$true] %s46
      %s48 = sshll.u32 [#allocation7], 4
      %s49 = int_to_ptr.vmem [resolvable:$true] %s48
      %54 = dma.hbm_to_vmem [thread:$0]  %s47, 4096, %s49, [#allocation6], 128, 128, 8
    $region17: #{tpu_custom_call.1} parent=1 // pred_fallthru
      _
    // Predicated region
    $region18: #{tpu_custom_call.1} parent=1 // pred_check
      _
    $region19: #{tpu_custom_call.1} parent=1 // pred_check_branch
      %56 = sbr.rel (0) target = $region21
    $region20: #{tpu_custom_call.1} parent=1 // pred_region
      _
    $region21: #{tpu_custom_call.1} parent=1 // pred_fallthru
      _
    // Predicated region
    $region22: #{tpu_custom_call.1} parent=1 // pred_check
      _
    $region23: #{tpu_custom_call.1} parent=1 // pred_check_branch
      %58 = sbr.rel (0) target = $region25
    $region24: #{tpu_custom_call.1} parent=1 // pred_region
      %60 = vsyncadd [#allocation9], 0
      %s61 = sshll.u32 %s5, 4
      %s62 = int_to_ptr.hbm [resolvable:$true] %s61
      %s63 = sshll.u32 [#allocation8], 4
      %s64 = int_to_ptr.vmem [resolvable:$true] %s63
      %69 = dma.hbm_to_vmem [thread:$0]  %s62, 2048, %s64, [#allocation9], 128, 128, 8
    $region25: #{tpu_custom_call.1} parent=1 // pred_fallthru
      _
    // Predicated region
    $region26: #{tpu_custom_call.1} parent=1 // pred_check
      _
    $region27: #{tpu_custom_call.1} parent=1 // pred_check_branch
      %71 = sbr.rel (0) target = $region29
    $region28: #{tpu_custom_call.1} parent=1 // pred_region
      _
    $region29: #{tpu_custom_call.1} parent=1 // pred_fallthru
      _
    // Predicated region
    $region30: #{tpu_custom_call.1} parent=1 // pred_check
      _
    $region31: #{tpu_custom_call.1} parent=1 // pred_check_branch
      %73 = sbr.rel (0) target = $region33
    $region32: #{tpu_custom_call.1} parent=1 // pred_region
      %75 = dma.done [#allocation3], 128
    $region33: #{tpu_custom_call.1} parent=1 // pred_fallthru
      _
    // Predicated region
    $region34: #{tpu_custom_call.1} parent=1 // pred_check
      _
    $region35: #{tpu_custom_call.1} parent=1 // pred_check_branch
      %77 = sbr.rel (0) target = $region37
    $region36: #{tpu_custom_call.1} parent=1 // pred_region
      %79 = dma.done [#allocation6], 2048
    $region37: #{tpu_custom_call.1} parent=1 // pred_fallthru
      _
    // Predicated region
    $region38: #{tpu_custom_call.1} parent=1 // pred_check
      _
    $region39: #{tpu_custom_call.1} parent=1 // pred_check_branch
      %81 = sbr.rel (0) target = $region41
    $region40: #{tpu_custom_call.1} parent=1 // pred_region
      %83 = dma.done [#allocation6], 4096
    $region41: #{tpu_custom_call.1} parent=1 // pred_fallthru
      _
    // Predicated region
    $region42: #{tpu_custom_call.1} parent=1 // pred_check
      _
    $region43: #{tpu_custom_call.1} parent=1 // pred_check_branch
      %85 = sbr.rel (0) target = $region45
    $region44: #{tpu_custom_call.1} parent=1 // pred_region
      %87 = dma.done [#allocation9], 2048
    $region45: #{tpu_custom_call.1} parent=1 // pred_fallthru
      _
    %v88 = vld [vmem:[#allocation2] sm:$0xff]
    %v89 = vld [vmem:[#allocation5] sm:$0xff]
    %v90 = vld [vmem:[#allocation5 + $0x8] sm:$0xff]
    %v91 = vld [vmem:[#allocation5 + $0x10] sm:$0xff]
    %v92 = vld [vmem:[#allocation5 + $0x18] sm:$0xff]
    %v93 = vld [vmem:[#allocation5 + $0x20] sm:$0xff]
    %v94 = vld [vmem:[#allocation5 + $0x28] sm:$0xff]
    %v95 = vld [vmem:[#allocation5 + $0x30] sm:$0xff]
    %v96 = vld [vmem:[#allocation5 + $0x38] sm:$0xff]
    %v97 = vld [vmem:[#allocation5 + $0x40] sm:$0xff]
    %v98 = vld [vmem:[#allocation5 + $0x48] sm:$0xff]
    %v99 = vld [vmem:[#allocation5 + $0x50] sm:$0xff]
    %v100 = vld [vmem:[#allocation5 + $0x58] sm:$0xff]
    %v101 = vld [vmem:[#allocation5 + $0x60] sm:$0xff]
    %v102 = vld [vmem:[#allocation5 + $0x68] sm:$0xff]
    %v103 = vld [vmem:[#allocation5 + $0x70] sm:$0xff]
    %v104 = vld [vmem:[#allocation5 + $0x78] sm:$0xff]
    %v105 = vld [vmem:[%s2] sm:$0x1]
    %v107 = vperm.slane %v105, 0
    %109 = vmatpush.msra.mxu0 %v104
    %110 = vmatpush.msra.mxu0 %v103
    %111 = vmatpush.msra.mxu0 %v102
    %112 = vmatpush.msra.mxu0 %v101
    %113 = vmatpush.msra.mxu0 %v100
    %114 = vmatpush.msra.mxu0 %v99
    %115 = vmatpush.msra.mxu0 %v98
    %116 = vmatpush.msra.mxu0 %v97
    %117 = vmatpush.msra.mxu0 %v96
    %118 = vmatpush.msra.mxu0 %v95
    %119 = vmatpush.msra.mxu0 %v94
    %120 = vmatpush.msra.mxu0 %v93
    %121 = vmatpush.msra.mxu0 %v92
    %122 = vmatpush.msra.mxu0 %v91
    %123 = vmatpush.msra.mxu0 %v90
    %124 = vmatpush.msra.mxu0 %v89
    %125 = vmatmul.f32.gmra.mxu0 %v88
    %v126 = vpop.f32.mrf.mxu0
    %v127 = vadd.f32 %v107, %v126
    %128 = vdwg.mxu0
    %v129 = vld [vmem:[#allocation7] sm:$0xff]
    %v130 = vld [vmem:[#allocation7 + $0x8] sm:$0xff]
    %v131 = vld [vmem:[#allocation7 + $0x10] sm:$0xff]
    %v132 = vld [vmem:[#allocation7 + $0x18] sm:$0xff]
    %v133 = vld [vmem:[#allocation7 + $0x20] sm:$0xff]
    %v134 = vld [vmem:[#allocation7 + $0x28] sm:$0xff]
    %v135 = vld [vmem:[#allocation7 + $0x30] sm:$0xff]
    %v136 = vld [vmem:[#allocation7 + $0x38] sm:$0xff]
    %v137 = vld [vmem:[#allocation7 + $0x40] sm:$0xff]
    %v138 = vld [vmem:[#allocation7 + $0x48] sm:$0xff]
    %v139 = vld [vmem:[#allocation7 + $0x50] sm:$0xff]
    %v140 = vld [vmem:[#allocation7 + $0x58] sm:$0xff]
    %v141 = vld [vmem:[#allocation7 + $0x60] sm:$0xff]
    %v142 = vld [vmem:[#allocation7 + $0x68] sm:$0xff]
    %v143 = vld [vmem:[#allocation7 + $0x70] sm:$0xff]
    %v144 = vld [vmem:[#allocation7 + $0x78] sm:$0xff]
    %v145 = vld [vmem:[%s4] sm:$0x1]
    %v147 = vperm.slane %v145, 0
    %149 = vmatpush.msra.mxu0 %v144
    %150 = vmatpush.msra.mxu0 %v143
    %151 = vmatpush.msra.mxu0 %v142
    %152 = vmatpush.msra.mxu0 %v141
    %153 = vmatpush.msra.mxu0 %v140
    %154 = vmatpush.msra.mxu0 %v139
    %155 = vmatpush.msra.mxu0 %v138
    %156 = vmatpush.msra.mxu0 %v137
    %157 = vmatpush.msra.mxu0 %v136
    %158 = vmatpush.msra.mxu0 %v135
    %159 = vmatpush.msra.mxu0 %v134
    %160 = vmatpush.msra.mxu0 %v133
    %161 = vmatpush.msra.mxu0 %v132
    %162 = vmatpush.msra.mxu0 %v131
    %163 = vmatpush.msra.mxu0 %v130
    %164 = vmatpush.msra.mxu0 %v129
    %165 = vmatmul.f32.gmra.mxu0 %v127
    %v166 = vpop.f32.mrf.mxu0
    %v167 = vadd.f32 %v147, %v166
    %168 = vdwg.mxu0
    %v169 = vmax.f32 %v167, 0.0
    %s170 = scalar_lea.vmem [#allocation7], 128
    %v171 = vld [vmem:[%s170] sm:$0xff]
    %v172 = vld [vmem:[%s170 + $0x8] sm:$0xff]
    %v173 = vld [vmem:[%s170 + $0x10] sm:$0xff]
    %v174 = vld [vmem:[%s170 + $0x18] sm:$0xff]
    %v175 = vld [vmem:[%s170 + $0x20] sm:$0xff]
    %v176 = vld [vmem:[%s170 + $0x28] sm:$0xff]
    %v177 = vld [vmem:[%s170 + $0x30] sm:$0xff]
    %v178 = vld [vmem:[%s170 + $0x38] sm:$0xff]
    %v179 = vld [vmem:[%s170 + $0x40] sm:$0xff]
    %v180 = vld [vmem:[%s170 + $0x48] sm:$0xff]
    %v181 = vld [vmem:[%s170 + $0x50] sm:$0xff]
    %v182 = vld [vmem:[%s170 + $0x58] sm:$0xff]
    %v183 = vld [vmem:[%s170 + $0x60] sm:$0xff]
    %v184 = vld [vmem:[%s170 + $0x68] sm:$0xff]
    %v185 = vld [vmem:[%s170 + $0x70] sm:$0xff]
    %v186 = vld [vmem:[%s170 + $0x78] sm:$0xff]
    %s187 = scalar_lea.vmem %s4, 1
    %v188 = vld [vmem:[%s187] sm:$0x1]
    %v190 = vperm.slane %v188, 0
    %192 = vmatpush.msra.mxu0 %v186
    %193 = vmatpush.msra.mxu0 %v185
    %194 = vmatpush.msra.mxu0 %v184
    %195 = vmatpush.msra.mxu0 %v183
    %196 = vmatpush.msra.mxu0 %v182
    %197 = vmatpush.msra.mxu0 %v181
    %198 = vmatpush.msra.mxu0 %v180
    %199 = vmatpush.msra.mxu0 %v179
    %200 = vmatpush.msra.mxu0 %v178
    %201 = vmatpush.msra.mxu0 %v177
    %202 = vmatpush.msra.mxu0 %v176
    %203 = vmatpush.msra.mxu0 %v175
    %204 = vmatpush.msra.mxu0 %v174
    %205 = vmatpush.msra.mxu0 %v173
    %206 = vmatpush.msra.mxu0 %v172
    %207 = vmatpush.msra.mxu0 %v171
    %208 = vmatmul.f32.gmra.mxu0 %v169
    %v209 = vpop.f32.mrf.mxu0
    %v210 = vadd.f32 %v190, %v209
    %211 = vdwg.mxu0
    %v212 = vmax.f32 %v210, 0.0
    %v213 = vld [vmem:[#allocation8] sm:$0xff]
    %v214 = vld [vmem:[#allocation8 + $0x8] sm:$0xff]
    %v215 = vld [vmem:[#allocation8 + $0x10] sm:$0xff]
    %v216 = vld [vmem:[#allocation8 + $0x18] sm:$0xff]
    %v217 = vld [vmem:[#allocation8 + $0x20] sm:$0xff]
    %v218 = vld [vmem:[#allocation8 + $0x28] sm:$0xff]
    %v219 = vld [vmem:[#allocation8 + $0x30] sm:$0xff]
    %v220 = vld [vmem:[#allocation8 + $0x38] sm:$0xff]
    %v221 = vld [vmem:[#allocation8 + $0x40] sm:$0xff]
    %v222 = vld [vmem:[#allocation8 + $0x48] sm:$0xff]
    %v223 = vld [vmem:[#allocation8 + $0x50] sm:$0xff]
    %v224 = vld [vmem:[#allocation8 + $0x58] sm:$0xff]
    %v225 = vld [vmem:[#allocation8 + $0x60] sm:$0xff]
    %v226 = vld [vmem:[#allocation8 + $0x68] sm:$0xff]
    %v227 = vld [vmem:[#allocation8 + $0x70] sm:$0xff]
    %v228 = vld [vmem:[#allocation8 + $0x78] sm:$0xff]
    %v229 = vld [vmem:[%s6] sm:$0x1]
    %v231 = vperm.slane %v229, 0
    %233 = vmatpush.msra.mxu0 %v228
    %234 = vmatpush.msra.mxu0 %v227
    %235 = vmatpush.msra.mxu0 %v226
    %236 = vmatpush.msra.mxu0 %v225
    %237 = vmatpush.msra.mxu0 %v224
    %238 = vmatpush.msra.mxu0 %v223
    %239 = vmatpush.msra.mxu0 %v222
    %240 = vmatpush.msra.mxu0 %v221
    %241 = vmatpush.msra.mxu0 %v220
    %242 = vmatpush.msra.mxu0 %v219
    %243 = vmatpush.msra.mxu0 %v218
    %244 = vmatpush.msra.mxu0 %v217
    %245 = vmatpush.msra.mxu0 %v216
    %246 = vmatpush.msra.mxu0 %v215
    %247 = vmatpush.msra.mxu0 %v214
    %248 = vmatpush.msra.mxu0 %v213
    %249 = vmatmul.f32.gmra.mxu0 %v212
    %v250 = vpop.f32.mrf.mxu0
    %v251 = vadd.f32 %v231, %v250
    %252 = vdwg.mxu0
    %253 = vst [vmem:[#allocation10] sm:$0xff] %v251
    // Predicated region
    $region46: #{tpu_custom_call.1} parent=1 // pred_check
      _
    $region47: #{tpu_custom_call.1} parent=1 // pred_check_branch
      %255 = sbr.rel (0) target = $region49
    $region48: #{tpu_custom_call.1} parent=1 // pred_region
      %257 = vsyncadd [#allocation4], 0
      %s259 = sshll.u32 [#allocation10], 4
      %s260 = int_to_ptr.vmem [resolvable:$true] %s259
      %s261 = sshll.u32 %s7, 4
      %s262 = int_to_ptr.hbm [resolvable:$true] %s261
      %264 = dma.vmem_to_hbm [thread:$0]  %s260, 128, %s262, [#allocation4]
    $region49: #{tpu_custom_call.1} parent=1 // pred_fallthru
      _
    // Predicated region
    $region50: #{tpu_custom_call.1} parent=1 // pred_check
      _
    $region51: #{tpu_custom_call.1} parent=1 // pred_check_branch
      %266 = sbr.rel (0) target = $region53
    $region52: #{tpu_custom_call.1} parent=1 // pred_region
      %268 = dma.done [#allocation4], 128
    $region53: #{tpu_custom_call.1} parent=1 // pred_fallthru
      _
    %269 = vsyncpa [#allocation3], 1
    %270 = vsyncpa [#allocation6], 1
    %271 = vsyncpa [#allocation9], 1
    %272 = vsyncpa [#allocation4], 1

</llo_original>
